<compile_context>
chip_gen: v5e
topology: v5e:2x2
jax: 0.10.0
libtpu: 0.0.40
codegen_flags: <defaults>
</compile_context>

<pallas_src>
import functools

import jax
import jax.numpy as jnp
from jax.experimental import pallas as pl
from jax.experimental.pallas import tpu as pltpu


def _pam_kernel(alpha_ref, a_ref, w_kv_ref, b_kv_ref, w_q_ref, b_q_ref,
                e_ref, bk_ref, dk_ref,
                *, C, tile_q, n_actual, needs_mask, feed_dtype):
    """One (batch, q-tile) step of positional attention with fused projections.

    a_ref : (C, N_pad)   per-batch resident input block
    bk_ref, dk_ref : (C, N_pad) VMEM-resident B/D projections (filled at q==0)
    e_ref : (C, tile_q)  output tile   E = alpha * DS + A
    """
    q = pl.program_id(1)

    # ---- keys/values: one fused (2C, C) @ (C, N_pad) matmul per batch ----
    @pl.when(q == 0)
    def _project_keys():
        a_full = a_ref[...].astype(feed_dtype)                    # (C, N_pad)
        w_kv = w_kv_ref[...].astype(feed_dtype)                   # (2C, C)
        r = jnp.dot(w_kv, a_full, preferred_element_type=jnp.float32)
        r = r + b_kv_ref[...]                                     # (2C, N_pad) f32
        bk_ref[...] = r[:C, :].astype(bk_ref.dtype)               # B proj (keys)
        dk_ref[...] = r[C:, :].astype(dk_ref.dtype)               # D proj (values)

    # ---- query projection for this tile only ----
    qstart = pl.multiple_of(q * tile_q, tile_q)
    a_q = a_ref[:, pl.ds(qstart, tile_q)]                         # (C, tile_q)
    cq = jnp.dot(w_q_ref[...].astype(feed_dtype), a_q.astype(feed_dtype),
                 preferred_element_type=jnp.float32) + b_q_ref[...]  # (C, tile_q) f32

    # Transposed logits LT[m, n] = sum_c Bk[c, m] * Cq[c, n]  -> (N_pad, tile_q)
    # (contract over the channel axis of both operands; no explicit transpose).
    lt = jax.lax.dot_general(
        bk_ref[...], cq.astype(feed_dtype),
        dimension_numbers=(((0,), (0,)), ((), ())),
        preferred_element_type=jnp.float32)

    if needs_mask:
        # Only padded KEY rows are masked; every query column keeps >= 1 valid
        # key (padding < tile), so the max below stays finite and exp(-inf)=0.
        key_idx = jax.lax.broadcasted_iota(jnp.int32, lt.shape, 0)
        lt = jnp.where(key_idx < n_actual, lt, -jnp.inf)

    # Two-pass softmax over the key (sublane) axis — no online rescale needed
    # because the whole key range is resident.
    m = jnp.max(lt, axis=0, keepdims=True)                        # (1, tile_q)
    p = jnp.exp(lt - m)                                           # (N_pad, tile_q)
    l = jnp.sum(p, axis=0, keepdims=True)                         # (1, tile_q)

    ds = jnp.dot(dk_ref[...], p.astype(feed_dtype),
                 preferred_element_type=jnp.float32)              # (C, tile_q)
    inv_l = pl.reciprocal(l, approx=False)                        # exact; once per q-tile
    e_ref[...] = (alpha_ref[0] * ds * inv_l
                  + a_q.astype(jnp.float32)).astype(e_ref.dtype)


def positional_attention_module(A, w_b, b_b, w_c, b_c, w_d, b_d, alpha,
                                *, tile_q=256, feed_dtype=jnp.bfloat16):
    """A: (batch, C, H, W). Returns E = alpha * (D @ softmax(C^T B)^T) + A.

    tile_q:     query/output pixel tile (multiple of 128). 256+ fills the
                v6e/v7x MXU output width; clamped to the padded pixel count.
    feed_dtype: MXU operand + resident key/value dtype. bf16 (default) is the
                right choice on v5e/v6e/v7x; accumulation/softmax stay f32.
    """
    Bsz, C, H, W = A.shape
    N = H * W
    assert tile_q % 128 == 0, "tile_q must be lane-dense (multiple of 128)"

    # Clamp tile_q for small images, then pad the pixel axis to a tile multiple.
    n128 = ((N + 127) // 128) * 128
    tile_q = min(tile_q, n128)
    N_pad = ((N + tile_q - 1) // tile_q) * tile_q
    needs_mask = N_pad != N
    n_q = N_pad // tile_q

    A_flat = A.reshape(Bsz, C, N)
    if needs_mask:
        A_flat = jnp.pad(A_flat, ((0, 0), (0, 0), (0, N_pad - N)))

    # Stack the B/D (key/value) 1x1-conv params into one fused projection.
    w_kv = jnp.concatenate([w_b, w_d], axis=0)                    # (2C, C)
    b_kv = jnp.concatenate([b_b, b_d], axis=0).reshape(2 * C, 1)
    b_q = b_c.reshape(C, 1)

    feed_dtype = jnp.dtype(feed_dtype)
    kernel = functools.partial(
        _pam_kernel, C=C, tile_q=tile_q, n_actual=N,
        needs_mask=needs_mask, feed_dtype=feed_dtype)

    E_flat = pl.pallas_call(
        kernel,
        out_shape=jax.ShapeDtypeStruct((Bsz, C, N_pad), A.dtype),
        grid=(Bsz, n_q),
        in_specs=[
            pl.BlockSpec(memory_space=pltpu.MemorySpace.SMEM),        # alpha (1,)
            pl.BlockSpec((None, C, N_pad), lambda b, q: (b, 0, 0)),   # A (per-batch resident)
            pl.BlockSpec((2 * C, C), lambda b, q: (0, 0)),            # stacked B/D weights
            pl.BlockSpec((2 * C, 1), lambda b, q: (0, 0)),            # stacked B/D bias
            pl.BlockSpec((C, C), lambda b, q: (0, 0)),                # C (query) weights
            pl.BlockSpec((C, 1), lambda b, q: (0, 0)),                # C (query) bias
        ],
        out_specs=pl.BlockSpec((None, C, tile_q), lambda b, q: (b, 0, q)),
        scratch_shapes=[
            pltpu.VMEM((C, N_pad), feed_dtype),   # resident B projection (keys)
            pltpu.VMEM((C, N_pad), feed_dtype),   # resident D projection (values)
        ],
        compiler_params=pltpu.CompilerParams(
            # Batch axis is parallel (megacore sharding on v7x keeps whole
            # batches per core). The q axis must stay "arbitrary": the
            # key/value scratch is filled at q == 0 and reused across the
            # batch's q-tiles.
            dimension_semantics=("parallel", "arbitrary"),
            vmem_limit_bytes=48 * 1024 * 1024),
    )(alpha.reshape(1), A_flat, w_kv, b_kv, w_c, b_q)

    if needs_mask:
        E_flat = E_flat[:, :, :N]
    return E_flat.reshape(Bsz, C, H, W)


def _reference(A, w_b, b_b, w_c, b_c, w_d, b_d, alpha):
    Bsz, C, H, W = A.shape
    N = H * W
    Af = A.reshape(Bsz, C, N)
    Bm = jnp.einsum('oc,bcn->bon', w_b, Af) + b_b[None, :, None]
    Cm = jnp.einsum('oc,bcn->bon', w_c, Af) + b_c[None, :, None]
    Dm = jnp.einsum('oc,bcn->bon', w_d, Af) + b_d[None, :, None]
    S = jax.nn.softmax(jnp.einsum('bcn,bcm->bnm', Cm, Bm), axis=-1)
    DS = jnp.einsum('bcm,bnm->bcn', Dm, S)
    return (alpha * DS + Af).reshape(Bsz, C, H, W)


if __name__ == "__main__":
    key = jax.random.PRNGKey(0)
    k_a, k_wb, k_wc, k_wd, k_bb, k_bc, k_bd = jax.random.split(key, 7)

    batch, C, H, W = 2, 4, 16, 16
    A = jax.random.normal(k_a, (batch, C, H, W), dtype=jnp.float32)

    # Conv params at std=0.02 like initialize_weights(); nonzero biases to
    # exercise the fused stacked-bias path.
    w_b = 0.02 * jax.random.normal(k_wb, (C, C), dtype=jnp.float32)
    w_c = 0.02 * jax.random.normal(k_wc, (C, C), dtype=jnp.float32)
    w_d = 0.02 * jax.random.normal(k_wd, (C, C), dtype=jnp.float32)
    b_b = 0.02 * jax.random.normal(k_bb, (C,), dtype=jnp.float32)
    b_c = 0.02 * jax.random.normal(k_bc, (C,), dtype=jnp.float32)
    b_d = 0.02 * jax.random.normal(k_bd, (C,), dtype=jnp.float32)
    # alpha is initialized to 0 in the module; use a nonzero value so DS contributes.
    alpha = jnp.array([0.5], dtype=jnp.float32)

    E_ref = _reference(A, w_b, b_b, w_c, b_c, w_d, b_d, alpha)

    # --- check 1: default path (bf16 MXU feeds, tile_q=256 -> single q tile) ---
    E = positional_attention_module(A, w_b, b_b, w_c, b_c, w_d, b_d, alpha)
    E = jax.block_until_ready(E)
    assert E.shape == (batch, C, H, W)
    assert jnp.allclose(E, E_ref, rtol=2e-2, atol=2e-2), "mismatch (bf16 path)"

    # --- check 2: f32 feeds, tile_q=128 -> 2 q tiles per batch; exercises the
    #     VMEM-resident key/value scratch being reused across q tiles ---
    E32 = positional_attention_module(A, w_b, b_b, w_c, b_c, w_d, b_d, alpha,
                                      tile_q=128, feed_dtype=jnp.float32)
    E32 = jax.block_until_ready(E32)
    assert jnp.allclose(E32, E_ref, rtol=2e-3, atol=2e-3), "mismatch (f32 path)"

    # --- check 3: padded pixels, N = 100 -> padded to 128; exercises key masking ---
    H2 = W2 = 10
    A2 = jax.random.normal(k_a, (batch, C, H2, W2), dtype=jnp.float32)
    E2 = positional_attention_module(A2, w_b, b_b, w_c, b_c, w_d, b_d, alpha,
                                     feed_dtype=jnp.float32)
    E2 = jax.block_until_ready(E2)
    E2_ref = _reference(A2, w_b, b_b, w_c, b_c, w_d, b_d, alpha)
    assert E2.shape == (batch, C, H2, W2)
    assert jnp.allclose(E2, E2_ref, rtol=2e-3, atol=2e-3), "mismatch (padded case)"

    print("KERNEL_OK")
</pallas_src>

<mosaic_0001>
module attributes {stable_mosaic.version = 11 : i64} {
  func.func @_pam_kernel(%arg0: i32, %arg1: i32, %arg2: memref<1xf32, #tpu.memory_space<smem>>, %arg3: memref<1x4x256xf32, #tpu.memory_space<vmem>>, %arg4: memref<8x4xf32, #tpu.memory_space<vmem>>, %arg5: memref<8x1xf32, #tpu.memory_space<vmem>>, %arg6: memref<4x4xf32, #tpu.memory_space<vmem>>, %arg7: memref<4x1xf32, #tpu.memory_space<vmem>>, %arg8: memref<1x4x256xf32, #tpu.memory_space<vmem>>, %arg9: memref<4x256xbf16, #tpu.memory_space<vmem>>, %arg10: memref<4x256xbf16, #tpu.memory_space<vmem>>) attributes {dimension_semantics = [#tpu.dimension_semantics<parallel>, #tpu.dimension_semantics<arbitrary>], iteration_bounds = array<i64: 2, 1>, scalar_prefetch = 0 : i64, scratch_operands = 2 : i64, tpu.core_type = #tpu.core_type<tc>, window_params = [{transform_indices = @transform_0, window_bounds = array<i64: 1>}, {transform_indices = @transform_1, window_bounds = array<i64: 1, 4, 256>}, {pipeline_mode = #tpu.pipeline_mode<synchronous>, transform_indices = @transform_2, window_bounds = array<i64: 8, 4>}, {pipeline_mode = #tpu.pipeline_mode<synchronous>, transform_indices = @transform_3, window_bounds = array<i64: 8, 1>}, {pipeline_mode = #tpu.pipeline_mode<synchronous>, transform_indices = @transform_4, window_bounds = array<i64: 4, 4>}, {pipeline_mode = #tpu.pipeline_mode<synchronous>, transform_indices = @transform_5, window_bounds = array<i64: 4, 1>}, {transform_indices = @transform_6, window_bounds = array<i64: 1, 4, 256>}]} {
    %c0_i32 = arith.constant 0 : i32
    %0 = arith.cmpi eq, %arg1, %c0_i32 : i32
    %1 = arith.extui %0 : i1 to i32
    %c0_i32_0 = arith.constant 0 : i32
    %2 = arith.cmpi ne, %1, %c0_i32_0 : i32
    scf.if %2 {
      %c0_18 = arith.constant 0 : index
      %c0_19 = arith.constant 0 : index
      %c0_20 = arith.constant 0 : index
      %38 = vector.load %arg3[%c0_18, %c0_19, %c0_20] : memref<1x4x256xf32, #tpu.memory_space<vmem>>, vector<1x4x256xf32>
      %39 = vector.shape_cast %38 : vector<1x4x256xf32> to vector<4x256xf32>
      %40 = arith.truncf %39 : vector<4x256xf32> to vector<4x256xbf16>
      %c0_21 = arith.constant 0 : index
      %c0_22 = arith.constant 0 : index
      %41 = vector.load %arg4[%c0_21, %c0_22] : memref<8x4xf32, #tpu.memory_space<vmem>>, vector<8x4xf32>
      %42 = arith.truncf %41 : vector<8x4xf32> to vector<8x4xbf16>
      %cst_23 = arith.constant dense<0.000000e+00> : vector<8x256xf32>
      %43 = tpu.matmul %42, %40, %cst_23 {dimension_numbers = #tpu.dot_dimension_numbers<[1], [0], [0], [1], [0, 0, 1, 1], [], []>} : vector<8x4xbf16>, vector<4x256xbf16>, vector<8x256xf32> -> vector<8x256xf32>
      %c0_24 = arith.constant 0 : index
      %c0_25 = arith.constant 0 : index
      %44 = vector.load %arg5[%c0_24, %c0_25] : memref<8x1xf32, #tpu.memory_space<vmem>>, vector<8x1xf32>
      %45 = vector.broadcast %44 : vector<8x1xf32> to vector<8x256xf32>
      %46 = arith.addf %43, %45 : vector<8x256xf32>
      %47 = vector.extract_strided_slice %46 {offsets = [0, 0], sizes = [4, 256], strides = [1, 1]} : vector<8x256xf32> to vector<4x256xf32>
      %48 = arith.truncf %47 : vector<4x256xf32> to vector<4x256xbf16>
      %c0_26 = arith.constant 0 : index
      %c0_27 = arith.constant 0 : index
      %49 = vector.load %arg9[%c0_26, %c0_27] : memref<4x256xbf16, #tpu.memory_space<vmem>>, vector<4x256xbf16>
      tpu.vector_store %arg9[%c0_26, %c0_27], %48 {strides = array<i32>} : memref<4x256xbf16, #tpu.memory_space<vmem>>, vector<4x256xbf16>,
      %50 = vector.extract_strided_slice %46 {offsets = [4, 0], sizes = [4, 256], strides = [1, 1]} : vector<8x256xf32> to vector<4x256xf32>
      %51 = arith.truncf %50 : vector<4x256xf32> to vector<4x256xbf16>
      %c0_28 = arith.constant 0 : index
      %c0_29 = arith.constant 0 : index
      %52 = vector.load %arg10[%c0_28, %c0_29] : memref<4x256xbf16, #tpu.memory_space<vmem>>, vector<4x256xbf16>
      tpu.vector_store %arg10[%c0_28, %c0_29], %51 {strides = array<i32>} : memref<4x256xbf16, #tpu.memory_space<vmem>>, vector<4x256xbf16>,
    } else {
    }
    %c256_i32 = arith.constant 256 : i32
    %3 = arith.muli %arg1, %c256_i32 : i32
    %4 = tpu.assume_multiple %3, 256 : i32
    %c0 = arith.constant 0 : index
    %c0_1 = arith.constant 0 : index
    %5 = arith.index_cast %4 : i32 to index
    %6 = vector.load %arg3[%c0, %c0_1, %5] : memref<1x4x256xf32, #tpu.memory_space<vmem>>, vector<1x4x256xf32>
    %7 = vector.shape_cast %6 : vector<1x4x256xf32> to vector<4x256xf32>
    %c0_2 = arith.constant 0 : index
    %c0_3 = arith.constant 0 : index
    %8 = vector.load %arg6[%c0_2, %c0_3] : memref<4x4xf32, #tpu.memory_space<vmem>>, vector<4x4xf32>
    %9 = arith.truncf %8 : vector<4x4xf32> to vector<4x4xbf16>
    %10 = arith.truncf %7 : vector<4x256xf32> to vector<4x256xbf16>
    %cst = arith.constant dense<0.000000e+00> : vector<4x256xf32>
    %11 = tpu.matmul %9, %10, %cst {dimension_numbers = #tpu.dot_dimension_numbers<[1], [0], [0], [1], [0, 0, 1, 1], [], []>} : vector<4x4xbf16>, vector<4x256xbf16>, vector<4x256xf32> -> vector<4x256xf32>
    %c0_4 = arith.constant 0 : index
    %c0_5 = arith.constant 0 : index
    %12 = vector.load %arg7[%c0_4, %c0_5] : memref<4x1xf32, #tpu.memory_space<vmem>>, vector<4x1xf32>
    %13 = vector.broadcast %12 : vector<4x1xf32> to vector<4x256xf32>
    %14 = arith.addf %11, %13 : vector<4x256xf32>
    %c0_6 = arith.constant 0 : index
    %c0_7 = arith.constant 0 : index
    %15 = vector.load %arg9[%c0_6, %c0_7] : memref<4x256xbf16, #tpu.memory_space<vmem>>, vector<4x256xbf16>
    %16 = arith.truncf %14 : vector<4x256xf32> to vector<4x256xbf16>
    %cst_8 = arith.constant dense<0.000000e+00> : vector<256x256xf32>
    %17 = tpu.matmul %15, %16, %cst_8 {dimension_numbers = #tpu.dot_dimension_numbers<[0], [0], [1], [1], [0, 1, 1, 1], [], []>} : vector<4x256xbf16>, vector<4x256xbf16>, vector<256x256xf32> -> vector<256x256xf32>
    %cst_9 = arith.constant dense<0xFF800000> : vector<256xf32>
    %18 = vector.multi_reduction <maximumf>, %17, %cst_9 [0] : vector<256x256xf32> to vector<256xf32>
    %19 = vector.shape_cast %18 : vector<256xf32> to vector<1x256xf32>
    %20 = vector.broadcast %19 : vector<1x256xf32> to vector<256x256xf32>
    %21 = arith.subf %17, %20 : vector<256x256xf32>
    %22 = math.exp %21 : vector<256x256xf32>
    %cst_10 = arith.constant dense<0.000000e+00> : vector<256xf32>
    %23 = vector.multi_reduction <add>, %22, %cst_10 [0] : vector<256x256xf32> to vector<256xf32>
    %24 = vector.shape_cast %23 : vector<256xf32> to vector<1x256xf32>
    %c0_11 = arith.constant 0 : index
    %c0_12 = arith.constant 0 : index
    %25 = vector.load %arg10[%c0_11, %c0_12] : memref<4x256xbf16, #tpu.memory_space<vmem>>, vector<4x256xbf16>
    %26 = arith.truncf %22 : vector<256x256xf32> to vector<256x256xbf16>
    %cst_13 = arith.constant dense<0.000000e+00> : vector<4x256xf32>
    %27 = tpu.matmul %25, %26, %cst_13 {dimension_numbers = #tpu.dot_dimension_numbers<[1], [0], [0], [1], [0, 0, 1, 1], [], []>} : vector<4x256xbf16>, vector<256x256xbf16>, vector<4x256xf32> -> vector<4x256xf32>
    %28 = tpu.reciprocal %24 : vector<1x256xf32> -> vector<1x256xf32>
    %c0_14 = arith.constant 0 : index
    %29 = memref.load %arg2[%c0_14] : memref<1xf32, #tpu.memory_space<smem>>
    %30 = vector.broadcast %29 : f32 to vector<4x256xf32>
    %31 = arith.mulf %30, %27 : vector<4x256xf32>
    %32 = vector.broadcast %28 : vector<1x256xf32> to vector<4x256xf32>
    %33 = arith.mulf %31, %32 : vector<4x256xf32>
    %34 = arith.addf %33, %7 : vector<4x256xf32>
    %c0_15 = arith.constant 0 : index
    %c0_16 = arith.constant 0 : index
    %c0_17 = arith.constant 0 : index
    %35 = vector.load %arg8[%c0_15, %c0_16, %c0_17] : memref<1x4x256xf32, #tpu.memory_space<vmem>>, vector<1x4x256xf32>
    %36 = vector.shape_cast %35 : vector<1x4x256xf32> to vector<4x256xf32>
    %37 = vector.shape_cast %34 : vector<4x256xf32> to vector<1x4x256xf32>
    tpu.vector_store %arg8[%c0_15, %c0_16, %c0_17], %37 {strides = array<i32>} : memref<1x4x256xf32, #tpu.memory_space<vmem>>, vector<1x4x256xf32>,
    return
  }
  func.func @transform_0(%arg0: i32, %arg1: i32) -> i32 {
    %c0_i32 = arith.constant 0 : i32
    %c0_i32_0 = arith.constant 0 : i32
    return %c0_i32 : i32
  }
  func.func @transform_1(%arg0: i32, %arg1: i32) -> (i32, i32, i32) {
    %c0_i32 = arith.constant 0 : i32
    %c0_i32_0 = arith.constant 0 : i32
    %c0_i32_1 = arith.constant 0 : i32
    return %arg0, %c0_i32, %c0_i32_0 : i32, i32, i32
  }
  func.func @transform_2(%arg0: i32, %arg1: i32) -> (i32, i32) {
    %c0_i32 = arith.constant 0 : i32
    %c0_i32_0 = arith.constant 0 : i32
    %c0_i32_1 = arith.constant 0 : i32
    return %c0_i32, %c0_i32_0 : i32, i32
  }
  func.func @transform_3(%arg0: i32, %arg1: i32) -> (i32, i32) {
    %c0_i32 = arith.constant 0 : i32
    %c0_i32_0 = arith.constant 0 : i32
    %c0_i32_1 = arith.constant 0 : i32
    return %c0_i32, %c0_i32_0 : i32, i32
  }
  func.func @transform_4(%arg0: i32, %arg1: i32) -> (i32, i32) {
    %c0_i32 = arith.constant 0 : i32
    %c0_i32_0 = arith.constant 0 : i32
    %c0_i32_1 = arith.constant 0 : i32
    return %c0_i32, %c0_i32_0 : i32, i32
  }
  func.func @transform_5(%arg0: i32, %arg1: i32) -> (i32, i32) {
    %c0_i32 = arith.constant 0 : i32
    %c0_i32_0 = arith.constant 0 : i32
    %c0_i32_1 = arith.constant 0 : i32
    return %c0_i32, %c0_i32_0 : i32, i32
  }
  func.func @transform_6(%arg0: i32, %arg1: i32) -> (i32, i32, i32) {
    %c0_i32 = arith.constant 0 : i32
    %c0_i32_0 = arith.constant 0 : i32
    return %arg0, %c0_i32, %arg1 : i32, i32, i32
  }
}

</mosaic_0001>

<llo_original>
// kernel: tpu_custom_call.1
$region0: #{tpu_custom_call.1}
  #allocation0 [shape = 'u32[]', space=smem, size = 0x4, offset = 0x4, fixed_abs, tag = 'smem constant byte address 0x4 - core index']
  #allocation1 [shape = 'u32[72,128]{1,0:T(1,128)}', space=vmem, size = 0x9000, scoped, tag = 'internal scratch']
  #allocation2 [shape = 'bf16[4,256]{1,0:T(4,128)(2,1)}', space=vmem, size = 0x800, scoped, tag = 'scratch operand']
  #allocation3 [shape = 'bf16[4,256]{1,0:T(4,128)(2,1)}', space=vmem, size = 0x800, scoped, tag = 'scratch operand']
  #allocation4 [shape = 'f32[1]{0:T(128)S(6)}', space=smem, size = 0x200, scoped, tag = 'scoped memory for tpu_custom_call.1']
  %s0 = inlined_call_operand.<no memory space> [shape: f32[1], index: 0, kind: input, shape index: {}]
  %s1 = inlined_call_operand.vmem [shape: f32[2,4,256], index: 1, kind: input, shape index: {}]
  %s2 = inlined_call_operand.vmem [shape: f32[8,4], index: 2, kind: input, shape index: {}]
  %s3 = inlined_call_operand.vmem [shape: f32[8,1], index: 3, kind: input, shape index: {}]
  %s4 = inlined_call_operand.vmem [shape: f32[4,4], index: 4, kind: input, shape index: {}]
  %s5 = inlined_call_operand.vmem [shape: f32[4,1], index: 5, kind: input, shape index: {}]
  %s6 = inlined_call_operand.hbm [shape: f32[2,4,256], index: 6, kind: output, shape index: {}]
  %s7 = sld [smem:[#allocation0]]
  $region61: #{tpu_custom_call.1} parent=0
    _
  %s9 = ssub.s32 1, %s7
  %s10 = scalar_select 0, %s9, %s7
  %11 = sst [smem:[#allocation4]] %s0
  $region1: #{tpu_custom_call.1} parent=0
    #allocation5 [shape = 'u8[8192]{0}', space=vmem, size = 0x2000, scoped, tag = 'output window, operand 0']
    #allocation6 [shape = 's32[2]{0}', space=sflag, size = 0x8, scoped, tag = 'scoped memory for tpu_custom_call.1']
    %12 = vsyncpa [#allocation6], 0
    %s13 = scalar_lea.sflag [#allocation6], 1
    %14 = vsyncpa %s13, 0
    loop: start=0, step=1, limit=4
    $region2: #{tpu_custom_call.1} parent=1 // loop_pre_header
      _
    $region3: #{tpu_custom_call.1} parent=1 // loop_header
      %s16 = sphi 0, %s20
      %p17 = scmp.ge.s32.totalorder %s16, 4
      %s23 = sphi 0, %s35
      %s24 = sphi 0, %s31
      %s25 = sphi 0, %s23
      %s26 = sphi 0, %s24
      %s27 = sphi 0, %s25
      %s28 = sphi 0, %s26
      %s36 = sphi 0, %s36
      %s38 = sphi 0, %s36
      %s39 = sphi 0, %s38
      %s53 = sphi 0, %s39
      %s59 = sphi 0, %s61
      %s62 = sphi 0, %s59
      %s63 = sphi 0, %s62
      %s79 = sphi 0, %s63
      %s83 = sphi 0, %s83
      %s85 = sphi 0, %s83
      %s86 = sphi 0, %s85
      %s100 = sphi 0, %s86
      %s104 = sphi 0, %s104
      %s106 = sphi 0, %s104
      %s107 = sphi 0, %s106
      %s121 = sphi 0, %s107
      %s125 = sphi 0, %s125
      %s127 = sphi 0, %s125
      %s128 = sphi 0, %s127
      %s142 = sphi 0, %s128
      %s146 = sphi 0, %s146
      %s148 = sphi 0, %s146
      %s149 = sphi 0, %s148
      %s163 = sphi 0, %s149
      %s171 = sphi 0, %s173
      %s174 = sphi 0, %s171
      %s175 = sphi 0, %s174
      %s191 = sphi 0, %s175
    $region4: #{tpu_custom_call.1} parent=1 // loop_header_branch
      %19 = sbr.rel (%p17) target = $region8
    $region5: #{tpu_custom_call.1} parent=1 // loop_body
      %s21 = ssub.s32 %s16, 1
      %s22 = ssub.s32 %s16, 2
      %s29 = sadd.s32 1, %s24
      %p30 = scmp.ge.s32.totalorder %s29, 1
      %s31 = scalar_select %p30, 0, %s29
      %s32 = sadd.s32 1, %s23
      %s33 = scalar_select %p30, %s32, %s23
      %p34 = scmp.ge.s32.totalorder %s33, 2
      %s35 = scalar_select %p34, 0, %s33
      %s37 = sadd.s32 %s36, 1
      %p40 = scmp.eq.s32.totalorder %s16, 1
      %p41 = scmp.ne.s32.totalorder %s36, %s38
      %p42 = scmp.eq.s32.totalorder %s16, 0
      %p43 = por %p41, %p42
      %p44 = scmp.ne.s32.totalorder %s36, %s38
      %p45 = scmp.eq.s32.totalorder %s21, 1
      %p46 = por %p44, %p45
      %p47 = scmp.ne.s32.totalorder %s38, %s39
      %p48 = scmp.eq.s32.totalorder %s21, 0
      %p49 = por %p47, %p48
      %p50 = scmp.ne.s32.totalorder %s38, %s39
      %p51 = scmp.eq.s32.totalorder %s22, 1
      %p52 = por %p50, %p51
      %p54 = scmp.ne.s32.totalorder %s39, %s53
      %p55 = scmp.eq.s32.totalorder %s22, 0
      %p56 = por %p54, %p55
      %s57 = ssub.s32 %s23, %s35
      %p58 = scmp.eq.s32.totalorder %s57, 0
      %s60 = sadd.s32 %s59, 1
      %s61 = scalar_select %p58, %s59, %s60
      %p64 = pneg %p58
      %p65 = scmp.eq.s32.totalorder %s16, 1
      %p66 = por %p64, %p65
      %p67 = scmp.ne.s32.totalorder %s59, %s62
      %p68 = scmp.eq.s32.totalorder %s16, 0
      %p69 = por %p67, %p68
      %p70 = scmp.ne.s32.totalorder %s59, %s62
      %p71 = scmp.eq.s32.totalorder %s21, 1
      %p72 = por %p70, %p71
      %p73 = scmp.ne.s32.totalorder %s62, %s63
      %p74 = scmp.eq.s32.totalorder %s21, 0
      %p75 = por %p73, %p74
      %p76 = scmp.ne.s32.totalorder %s62, %s63
      %p77 = scmp.eq.s32.totalorder %s22, 1
      %p78 = por %p76, %p77
      %p80 = scmp.ne.s32.totalorder %s63, %s79
      %p81 = scmp.eq.s32.totalorder %s22, 0
      %p82 = por %p80, %p81
      %s84 = sadd.s32 %s83, 1
      %p87 = scmp.eq.s32.totalorder %s16, 1
      %p88 = scmp.ne.s32.totalorder %s83, %s85
      %p89 = scmp.eq.s32.totalorder %s16, 0
      %p90 = por %p88, %p89
      %p91 = scmp.ne.s32.totalorder %s83, %s85
      %p92 = scmp.eq.s32.totalorder %s21, 1
      %p93 = por %p91, %p92
      %p94 = scmp.ne.s32.totalorder %s85, %s86
      %p95 = scmp.eq.s32.totalorder %s21, 0
      %p96 = por %p94, %p95
      %p97 = scmp.ne.s32.totalorder %s85, %s86
      %p98 = scmp.eq.s32.totalorder %s22, 1
      %p99 = por %p97, %p98
      %p101 = scmp.ne.s32.totalorder %s86, %s100
      %p102 = scmp.eq.s32.totalorder %s22, 0
      %p103 = por %p101, %p102
      %s105 = sadd.s32 %s104, 1
      %p108 = scmp.eq.s32.totalorder %s16, 1
      %p109 = scmp.ne.s32.totalorder %s104, %s106
      %p110 = scmp.eq.s32.totalorder %s16, 0
      %p111 = por %p109, %p110
      %p112 = scmp.ne.s32.totalorder %s104, %s106
      %p113 = scmp.eq.s32.totalorder %s21, 1
      %p114 = por %p112, %p113
      %p115 = scmp.ne.s32.totalorder %s106, %s107
      %p116 = scmp.eq.s32.totalorder %s21, 0
      %p117 = por %p115, %p116
      %p118 = scmp.ne.s32.totalorder %s106, %s107
      %p119 = scmp.eq.s32.totalorder %s22, 1
      %p120 = por %p118, %p119
      %p122 = scmp.ne.s32.totalorder %s107, %s121
      %p123 = scmp.eq.s32.totalorder %s22, 0
      %p124 = por %p122, %p123
      %s126 = sadd.s32 %s125, 1
      %p129 = scmp.eq.s32.totalorder %s16, 1
      %p130 = scmp.ne.s32.totalorder %s125, %s127
      %p131 = scmp.eq.s32.totalorder %s16, 0
      %p132 = por %p130, %p131
      %p133 = scmp.ne.s32.totalorder %s125, %s127
      %p134 = scmp.eq.s32.totalorder %s21, 1
      %p135 = por %p133, %p134
      %p136 = scmp.ne.s32.totalorder %s127, %s128
      %p137 = scmp.eq.s32.totalorder %s21, 0
      %p138 = por %p136, %p137
      %p139 = scmp.ne.s32.totalorder %s127, %s128
      %p140 = scmp.eq.s32.totalorder %s22, 1
      %p141 = por %p139, %p140
      %p143 = scmp.ne.s32.totalorder %s128, %s142
      %p144 = scmp.eq.s32.totalorder %s22, 0
      %p145 = por %p143, %p144
      %s147 = sadd.s32 %s146, 1
      %p150 = scmp.eq.s32.totalorder %s16, 1
      %p151 = scmp.ne.s32.totalorder %s146, %s148
      %p152 = scmp.eq.s32.totalorder %s16, 0
      %p153 = por %p151, %p152
      %p154 = scmp.ne.s32.totalorder %s146, %s148
      %p155 = scmp.eq.s32.totalorder %s21, 1
      %p156 = por %p154, %p155
      %p157 = scmp.ne.s32.totalorder %s148, %s149
      %p158 = scmp.eq.s32.totalorder %s21, 0
      %p159 = por %p157, %p158
      %p160 = scmp.ne.s32.totalorder %s148, %s149
      %p161 = scmp.eq.s32.totalorder %s22, 1
      %p162 = por %p160, %p161
      %p164 = scmp.ne.s32.totalorder %s149, %s163
      %p165 = scmp.eq.s32.totalorder %s22, 0
      %p166 = por %p164, %p165
      %s167 = ssub.s32 %s23, %s35
      %s168 = ssub.s32 %s24, %s31
      %s169 = sor.u32 %s167, %s168
      %p170 = scmp.eq.s32.totalorder %s169, 0
      %s172 = sadd.s32 %s171, 1
      %s173 = scalar_select %p170, %s171, %s172
      %p176 = pneg %p170
      %p177 = scmp.eq.s32.totalorder %s16, 1
      %p178 = por %p176, %p177
      %p179 = scmp.ne.s32.totalorder %s171, %s174
      %p180 = scmp.eq.s32.totalorder %s16, 0
      %p181 = por %p179, %p180
      %p182 = scmp.ne.s32.totalorder %s171, %s174
      %p183 = scmp.eq.s32.totalorder %s21, 1
      %p184 = por %p182, %p183
      %p185 = scmp.ne.s32.totalorder %s174, %s175
      %p186 = scmp.eq.s32.totalorder %s21, 0
      %p187 = por %p185, %p186
      %p188 = scmp.ne.s32.totalorder %s174, %s175
      %p189 = scmp.eq.s32.totalorder %s22, 1
      %p190 = por %p188, %p189
      %p192 = scmp.ne.s32.totalorder %s175, %s191
      %p193 = scmp.eq.s32.totalorder %s22, 0
      %p194 = por %p192, %p193
      %p195 = scmp.le.s32.totalorder 1, %s16
      %p196 = scmp.lt.s32.totalorder %s16, 3
      %p197 = pnand %p195, %p196
      %p198 = pneg %p197
      // Predicated region
      $region9: #{tpu_custom_call.1} parent=5 // pred_check
        _
      $region10: #{tpu_custom_call.1} parent=5 // pred_check_branch
        %200 = sbr.rel (%p197) target = $region12
      $region11: #{tpu_custom_call.1} parent=5 // pred_region
        %s201 = ssub.s32 %s16, 1
        // Predicated region
        $region13: #{tpu_custom_call.1} parent=11 // pred_check
          %p202 = pneg %p49
        $region14: #{tpu_custom_call.1} parent=11 // pred_check_branch
          %204 = sbr.rel (%p202) target = $region16
        $region15: #{tpu_custom_call.1} parent=11 // pred_region
          _
        $region16: #{tpu_custom_call.1} parent=11 // pred_fallthru
          _
        // Predicated region
        $region17: #{tpu_custom_call.1} parent=11 // pred_check
          %p205 = pneg %p96
        $region18: #{tpu_custom_call.1} parent=11 // pred_check_branch
          %207 = sbr.rel (%p205) target = $region20
        $region19: #{tpu_custom_call.1} parent=11 // pred_region
          _
        $region20: #{tpu_custom_call.1} parent=11 // pred_fallthru
          _
        // Predicated region
        $region21: #{tpu_custom_call.1} parent=11 // pred_check
          %p208 = pneg %p117
        $region22: #{tpu_custom_call.1} parent=11 // pred_check_branch
          %210 = sbr.rel (%p208) target = $region24
        $region23: #{tpu_custom_call.1} parent=11 // pred_region
          _
        $region24: #{tpu_custom_call.1} parent=11 // pred_fallthru
          _
        // Predicated region
        $region25: #{tpu_custom_call.1} parent=11 // pred_check
          %p211 = pneg %p138
        $region26: #{tpu_custom_call.1} parent=11 // pred_check_branch
          %213 = sbr.rel (%p211) target = $region28
        $region27: #{tpu_custom_call.1} parent=11 // pred_region
          _
        $region28: #{tpu_custom_call.1} parent=11 // pred_fallthru
          _
        // Predicated region
        $region29: #{tpu_custom_call.1} parent=11 // pred_check
          %p214 = pneg %p159
        $region30: #{tpu_custom_call.1} parent=11 // pred_check_branch
          %216 = sbr.rel (%p214) target = $region32
        $region31: #{tpu_custom_call.1} parent=11 // pred_region
          _
        $region32: #{tpu_custom_call.1} parent=11 // pred_fallthru
          _
      $region12: #{tpu_custom_call.1} parent=5 // pred_fallthru
        _
      %p217 = scmp.lt.s32.totalorder %s16, 2
      // Predicated region
      $region33: #{tpu_custom_call.1} parent=5 // pred_check
        %p218 = pneg %p217
      $region34: #{tpu_custom_call.1} parent=5 // pred_check_branch
        %220 = sbr.rel (%p218) target = $region36
      $region35: #{tpu_custom_call.1} parent=5 // pred_region
        // Predicated region
        $region37: #{tpu_custom_call.1} parent=35 // pred_check
          %p221 = pneg %p69
        $region38: #{tpu_custom_call.1} parent=35 // pred_check_branch
          %223 = sbr.rel (%p221) target = $region40
        $region39: #{tpu_custom_call.1} parent=35 // pred_region
          %p224 = scmp.lt.s32.totalorder %s23, 1
          %s225 = scalar_select %p224, %s23, 1
          %s226 = smul.addr %s225, 2
          %s227 = smul.addr %s226, 4
          %s228 = scalar_lea.vmem %s1, %s227
        $region40: #{tpu_custom_call.1} parent=35 // pred_fallthru
          _
      $region36: #{tpu_custom_call.1} parent=5 // pred_fallthru
        _
      %p229 = scmp.le.s32.totalorder 1, %s16
      %p230 = scmp.lt.s32.totalorder %s16, 3
      %p231 = pnand %p229, %p230
      %p232 = pneg %p231
      // Predicated region
      $region41: #{tpu_custom_call.1} parent=5 // pred_check
        _
      $region42: #{tpu_custom_call.1} parent=5 // pred_check_branch
        %234 = sbr.rel (%p231) target = $region44
      $region43: #{tpu_custom_call.1} parent=5 // pred_region
        %s235 = ssub.s32 %s16, 1
        %p236 = pneg %p49
        %p237 = pneg %p46
        %p238 = scmp.lt.s32.totalorder %s25, 1
        %s239 = scalar_select %p238, %s25, 1
        %s240 = smul.addr %s239, 2
        %s241 = smul.addr %s240, 4
        %s242 = scalar_lea.vmem %s1, %s241
        %p243 = pneg %p75
        %p244 = pneg %p72
        %p245 = pneg %p96
        %p246 = pneg %p93
        %p247 = pneg %p117
        %p248 = pneg %p114
        %p249 = pneg %p138
        %p250 = pneg %p135
        %p251 = pneg %p159
        %p252 = pneg %p156
        %p253 = pneg %p187
        %p254 = pneg %p184
        %s255 = sand.u32 %s174, 1
        %s256 = scalar_lea.sflag [#allocation6], %s255
        %s257 = sand.u32 %s174, 1
        %s258 = smul.addr %s257, 8
        %s259 = scalar_lea.vmem [#allocation5], %s258
        %p260 = scmp.lt.s32.totalorder %s25, 1
        %s261 = scalar_select %p260, %s25, 1
        %s262 = smul.addr %s261, 2
        %s263 = smul.addr %s262, 4
        %s264 = scalar_lea.vmem %s1, %s263
        %s265 = smul.u32 2, %s26
        %p267 = scmp.eq.s32.totalorder %s26, 0
        // Predicated region
        $region45: #{tpu_custom_call.1} parent=43 // pred_check
          %p268 = pneg %p267
        $region46: #{tpu_custom_call.1} parent=43 // pred_check_branch
          %270 = sbr.rel (%p268) target = $region48
        $region47: #{tpu_custom_call.1} parent=43 // pred_region
          %v271 = vld [vmem:[%s264] sm:$0xff]
          %273 = vst [vmem:[#allocation1] ss:$2 sm:$0xff] %v271
          %v274 = vld.sshfl [vmem:[#allocation1] sm:$0xff pattern:$0x75316420]
          %v275 = vld.sshfl [vmem:[#allocation1 + $0x8] sm:$0xff pattern:$0x75316420]
          %v278 = vpack.c.bf16 %v274, %v274
          %v279 = vpack.c.bf16 %v275, %v275
          %v280 = vld [vmem:[%s2] sm:$0xff]
          %v281 = vpack.c.bf16 %v280, %v280
          %v282 = vld [vmem:[%s3] sm:$0xff]
          %284 = vset.pattern.permute.xlu0 0
          %285 = vperm.xlu0 %284, %v282
          %v286 = vpop.permute.xlu0 %285
          %vm288 = vcmask 31744
          %v290 = vsel %vm288, %v281, 0
          %vm292 = vcmask 1041408
          %v294 = vsel %vm292, %v278, 0
          %v297 = vsel %vm292, %v279, 0
          %299 = vmatpush.bf16.msra.mxu0 0
          %300 = vmatpush.bf16.msra.mxu0 0
          %301 = vmatpush.bf16.msra.mxu0 0
          %302 = vmatpush.bf16.msra.mxu0 0
          %303 = vmatpush.bf16.msra.mxu0 0
          %304 = vmatpush.bf16.msra.mxu0 0
          %305 = vmatpush.bf16.msra.mxu0 0
          %306 = vmatpush.bf16.msra.mxu0 %v294
          %307 = vmatmul.bf16.gmra.mxu0 %v290
          %v308 = vpop.f32.mrf.mxu0
          %v309 = vadd.f32 %v286, %v308
          %v310 = vpop.f32.mrf.mxu0
          %311 = vdwg.mxu0
          %312 = vmatpush.bf16.msra.mxu0 0
          %313 = vmatpush.bf16.msra.mxu0 0
          %314 = vmatpush.bf16.msra.mxu0 0
          %315 = vmatpush.bf16.msra.mxu0 0
          %316 = vmatpush.bf16.msra.mxu0 0
          %317 = vmatpush.bf16.msra.mxu0 0
          %318 = vmatpush.bf16.msra.mxu0 0
          %319 = vmatpush.bf16.msra.mxu0 %v297
          %320 = vmatmul.bf16.gmra.mxu0 %v290
          %v321 = vpop.f32.mrf.mxu0
          %v322 = vadd.f32 %v286, %v321
          %v323 = vpop.f32.mrf.mxu0
          %324 = vdwg.mxu0
          %v325 = vpack.c.bf16 %v322, %v309
          %v327 = vrot.slane %v325, 2
          %v330 = vsel %vm292, %v325, %v327
          %332 = vst [vmem:[#allocation2] sm:$0xf] %v330
          %333 = vst.sshfl [vmem:[#allocation1] sm:$0xff pattern:$0x75643120] %v325
          %s334 = scalar_lea.vmem [#allocation1], 1
          %v335 = vld [vmem:[%s334] ss:$2 sm:$0xff]
          %337 = vst [vmem:[#allocation3] sm:$0xf] %v335
        $region48: #{tpu_custom_call.1} parent=43 // pred_fallthru
          _
        %s338 = smul.u32 %s26, 256
        %s339 = sshra.s32 %s338, 7
        %s340 = sand.u32 %s338, 127
        %s341 = smul.addr %s339, 4
        %s342 = scalar_lea.vmem %s264, %s341
        %v343 = vld [vmem:[%s342] sm:$0xff]
        %v344 = vld [vmem:[%s4] sm:$0xf]
        %v345 = vpack.c.bf16 %v344, %v344
        %347 = vst [vmem:[#allocation1] ss:$2 sm:$0xff] %v343
        %v348 = vld.sshfl [vmem:[#allocation1] sm:$0xff pattern:$0x75316420]
        %v349 = vld.sshfl [vmem:[#allocation1 + $0x8] sm:$0xff pattern:$0x75316420]
        %v352 = vpack.c.bf16 %v348, %v348
        %v353 = vpack.c.bf16 %v349, %v349
        %v354 = vld [vmem:[%s5] sm:$0xf]
        %356 = vset.pattern.permute.xlu0 0
        %357 = vperm.xlu0 %356, %v354
        %v358 = vpop.permute.xlu0 %357
        %vm360 = vcmask 31744
        %v362 = vsel %vm360, %v345, 0
        %vm364 = vcmask 1041408
        %v366 = vsel %vm364, %v352, 0
        %v369 = vsel %vm364, %v353, 0
        %371 = vmatpush.bf16.msra.mxu0 0
        %372 = vmatpush.bf16.msra.mxu0 0
        %373 = vmatpush.bf16.msra.mxu0 0
        %374 = vmatpush.bf16.msra.mxu0 0
        %375 = vmatpush.bf16.msra.mxu0 0
        %376 = vmatpush.bf16.msra.mxu0 0
        %377 = vmatpush.bf16.msra.mxu0 0
        %378 = vmatpush.bf16.msra.mxu0 %v366
        %379 = vmatmul.bf16.gmra.mxu0 %v362
        %v380 = vpop.f32.mrf.mxu0
        %v381 = vadd.f32 %v358, %v380
        %v382 = vpop.f32.mrf.mxu0
        %383 = vdwg.mxu0
        %384 = vmatpush.bf16.msra.mxu0 0
        %385 = vmatpush.bf16.msra.mxu0 0
        %386 = vmatpush.bf16.msra.mxu0 0
        %387 = vmatpush.bf16.msra.mxu0 0
        %388 = vmatpush.bf16.msra.mxu0 0
        %389 = vmatpush.bf16.msra.mxu0 0
        %390 = vmatpush.bf16.msra.mxu0 0
        %391 = vmatpush.bf16.msra.mxu0 %v369
        %392 = vmatmul.bf16.gmra.mxu0 %v362
        %v393 = vpop.f32.mrf.mxu0
        %v394 = vadd.f32 %v358, %v393
        %v395 = vpop.f32.mrf.mxu0
        %396 = vdwg.mxu0
        %v397 = vld [vmem:[#allocation2] sm:$0xf]
        %v398 = vpack.c.bf16 %v381, %v381
        %v399 = vpack.c.bf16 %v394, %v394
        %401 = vst [vmem:[#allocation1] ss:$4 sm:$0xff] %v397
        %v402 = vld.sshfl [vmem:[#allocation1] sm:$0xff pattern:$0x73625140]
        %v403 = vld.sshfl [vmem:[#allocation1 + $0x8] sm:$0xff pattern:$0x73625140]
        %406 = vxpose.binary.xlu0.c.b16.start [1/16] %v403, %v402, 128
        %407 = vxpose.binary.xlu0.c.b16.cont [2/16] 0, 0, 128
        %408 = vxpose.binary.xlu0.c.b16.cont [3/16] 0, 0, 128
        %409 = vxpose.binary.xlu0.c.b16.cont [4/16] 0, 0, 128
        %410 = vxpose.binary.xlu0.c.b16.cont [5/16] 0, 0, 128
        %411 = vxpose.binary.xlu0.c.b16.cont [6/16] 0, 0, 128
        %412 = vxpose.binary.xlu0.c.b16.cont [7/16] 0, 0, 128
        %413 = vxpose.binary.xlu0.c.b16.end [8/16] 0, 0, 128
        %v414 = vpop.trf.xlu0
        %v415 = vpop.trf.xlu0
        %v416 = vpop.trf.xlu0
        %v417 = vpop.trf.xlu0
        %v418 = vpop.trf.xlu0
        %v419 = vpop.trf.xlu0
        %v420 = vpop.trf.xlu0
        %v421 = vpop.trf.xlu0
        %v422 = vpop.trf.xlu0
        %v423 = vpop.trf.xlu0
        %v424 = vpop.trf.xlu0
        %v425 = vpop.trf.xlu0
        %v426 = vpop.trf.xlu0
        %v427 = vpop.trf.xlu0
        %v428 = vpop.trf.xlu0
        %v429 = vpop.trf.xlu0
        %v431 = vsel %vm360, %v414, 0
        %v434 = vsel %vm360, %v416, 0
        %v437 = vsel %vm360, %v418, 0
        %v440 = vsel %vm360, %v420, 0
        %v443 = vsel %vm360, %v422, 0
        %v446 = vsel %vm360, %v424, 0
        %v449 = vsel %vm360, %v426, 0
        %v452 = vsel %vm360, %v428, 0
        %v455 = vsel %vm360, %v415, 0
        %v458 = vsel %vm360, %v417, 0
        %v461 = vsel %vm360, %v419, 0
        %v464 = vsel %vm360, %v421, 0
        %v467 = vsel %vm360, %v423, 0
        %v470 = vsel %vm360, %v425, 0
        %v473 = vsel %vm360, %v427, 0
        %v476 = vsel %vm360, %v429, 0
        %v479 = vsel %vm364, %v398, 0
        %v482 = vsel %vm364, %v399, 0
        %484 = vmatpush.bf16.msra.mxu0 0
        %485 = vmatpush.bf16.msra.mxu0 0
        %486 = vmatpush.bf16.msra.mxu0 0
        %487 = vmatpush.bf16.msra.mxu0 0
        %488 = vmatpush.bf16.msra.mxu0 0
        %489 = vmatpush.bf16.msra.mxu0 0
        %490 = vmatpush.bf16.msra.mxu0 0
        %491 = vmatpush.bf16.msra.mxu0 %v479
        %492 = vmatmul.bf16.gmra.mxu0 %v431
        %v493 = vpop.f32.mrf.mxu0
        %v494 = vadd.f32 0.0, %v493
        %v495 = vpop.f32.mrf.mxu0
        %v496 = vadd.f32 0.0, %v495
        %497 = vmatmul.bf16.gmra.mxu0 %v434
        %v498 = vpop.f32.mrf.mxu0
        %v499 = vadd.f32 0.0, %v498
        %v500 = vpop.f32.mrf.mxu0
        %v501 = vadd.f32 0.0, %v500
        %502 = vmatmul.bf16.gmra.mxu0 %v437
        %v503 = vpop.f32.mrf.mxu0
        %v504 = vadd.f32 0.0, %v503
        %v505 = vpop.f32.mrf.mxu0
        %v506 = vadd.f32 0.0, %v505
        %507 = vmatmul.bf16.gmra.mxu0 %v440
        %v508 = vpop.f32.mrf.mxu0
        %v509 = vadd.f32 0.0, %v508
        %v510 = vpop.f32.mrf.mxu0
        %v511 = vadd.f32 0.0, %v510
        %512 = vmatmul.bf16.gmra.mxu0 %v443
        %v513 = vpop.f32.mrf.mxu0
        %v514 = vadd.f32 0.0, %v513
        %v515 = vpop.f32.mrf.mxu0
        %v516 = vadd.f32 0.0, %v515
        %517 = vmatmul.bf16.gmra.mxu0 %v446
        %v518 = vpop.f32.mrf.mxu0
        %v519 = vadd.f32 0.0, %v518
        %v520 = vpop.f32.mrf.mxu0
        %v521 = vadd.f32 0.0, %v520
        %522 = vmatmul.bf16.gmra.mxu0 %v449
        %v523 = vpop.f32.mrf.mxu0
        %v524 = vadd.f32 0.0, %v523
        %v525 = vpop.f32.mrf.mxu0
        %v526 = vadd.f32 0.0, %v525
        %527 = vmatmul.bf16.gmra.mxu0 %v452
        %v528 = vpop.f32.mrf.mxu0
        %v529 = vadd.f32 0.0, %v528
        %v530 = vpop.f32.mrf.mxu0
        %v531 = vadd.f32 0.0, %v530
        %532 = vmatmul.bf16.gmra.mxu0 %v455
        %v533 = vpop.f32.mrf.mxu0
        %v534 = vadd.f32 0.0, %v533
        %v535 = vpop.f32.mrf.mxu0
        %v536 = vadd.f32 0.0, %v535
        %537 = vmatmul.bf16.gmra.mxu0 %v458
        %v538 = vpop.f32.mrf.mxu0
        %v539 = vadd.f32 0.0, %v538
        %v540 = vpop.f32.mrf.mxu0
        %v541 = vadd.f32 0.0, %v540
        %542 = vmatmul.bf16.gmra.mxu0 %v461
        %v543 = vpop.f32.mrf.mxu0
        %v544 = vadd.f32 0.0, %v543
        %v545 = vpop.f32.mrf.mxu0
        %v546 = vadd.f32 0.0, %v545
        %547 = vmatmul.bf16.gmra.mxu0 %v464
        %v548 = vpop.f32.mrf.mxu0
        %v549 = vadd.f32 0.0, %v548
        %v550 = vpop.f32.mrf.mxu0
        %v551 = vadd.f32 0.0, %v550
        %552 = vmatmul.bf16.gmra.mxu0 %v467
        %v553 = vpop.f32.mrf.mxu0
        %v554 = vadd.f32 0.0, %v553
        %v555 = vpop.f32.mrf.mxu0
        %v556 = vadd.f32 0.0, %v555
        %557 = vmatmul.bf16.gmra.mxu0 %v470
        %v558 = vpop.f32.mrf.mxu0
        %v559 = vadd.f32 0.0, %v558
        %v560 = vpop.f32.mrf.mxu0
        %v561 = vadd.f32 0.0, %v560
        %562 = vmatmul.bf16.gmra.mxu0 %v473
        %v563 = vpop.f32.mrf.mxu0
        %v564 = vadd.f32 0.0, %v563
        %v565 = vpop.f32.mrf.mxu0
        %v566 = vadd.f32 0.0, %v565
        %567 = vmatmul.bf16.gmra.mxu0 %v476
        %v568 = vpop.f32.mrf.mxu0
        %v569 = vadd.f32 0.0, %v568
        %v570 = vpop.f32.mrf.mxu0
        %v571 = vadd.f32 0.0, %v570
        %572 = vdwg.mxu0
        %573 = vmatpush.bf16.msra.mxu0 0
        %574 = vmatpush.bf16.msra.mxu0 0
        %575 = vmatpush.bf16.msra.mxu0 0
        %576 = vmatpush.bf16.msra.mxu0 0
        %577 = vmatpush.bf16.msra.mxu0 0
        %578 = vmatpush.bf16.msra.mxu0 0
        %579 = vmatpush.bf16.msra.mxu0 0
        %580 = vmatpush.bf16.msra.mxu0 %v482
        %581 = vmatmul.bf16.gmra.mxu0 %v431
        %v582 = vpop.f32.mrf.mxu0
        %v583 = vadd.f32 0.0, %v582
        %v584 = vpop.f32.mrf.mxu0
        %v585 = vadd.f32 0.0, %v584
        %586 = vmatmul.bf16.gmra.mxu0 %v434
        %v587 = vpop.f32.mrf.mxu0
        %v588 = vadd.f32 0.0, %v587
        %v589 = vpop.f32.mrf.mxu0
        %v590 = vadd.f32 0.0, %v589
        %591 = vmatmul.bf16.gmra.mxu0 %v437
        %v592 = vpop.f32.mrf.mxu0
        %v593 = vadd.f32 0.0, %v592
        %v594 = vpop.f32.mrf.mxu0
        %v595 = vadd.f32 0.0, %v594
        %596 = vmatmul.bf16.gmra.mxu0 %v440
        %v597 = vpop.f32.mrf.mxu0
        %v598 = vadd.f32 0.0, %v597
        %v599 = vpop.f32.mrf.mxu0
        %v600 = vadd.f32 0.0, %v599
        %601 = vmatmul.bf16.gmra.mxu0 %v443
        %v602 = vpop.f32.mrf.mxu0
        %v603 = vadd.f32 0.0, %v602
        %v604 = vpop.f32.mrf.mxu0
        %v605 = vadd.f32 0.0, %v604
        %606 = vmatmul.bf16.gmra.mxu0 %v446
        %v607 = vpop.f32.mrf.mxu0
        %v608 = vadd.f32 0.0, %v607
        %v609 = vpop.f32.mrf.mxu0
        %v610 = vadd.f32 0.0, %v609
        %611 = vmatmul.bf16.gmra.mxu0 %v449
        %v612 = vpop.f32.mrf.mxu0
        %v613 = vadd.f32 0.0, %v612
        %v614 = vpop.f32.mrf.mxu0
        %v615 = vadd.f32 0.0, %v614
        %616 = vmatmul.bf16.gmra.mxu0 %v452
        %v617 = vpop.f32.mrf.mxu0
        %v618 = vadd.f32 0.0, %v617
        %v619 = vpop.f32.mrf.mxu0
        %v620 = vadd.f32 0.0, %v619
        %621 = vmatmul.bf16.gmra.mxu0 %v455
        %v622 = vpop.f32.mrf.mxu0
        %v623 = vadd.f32 0.0, %v622
        %v624 = vpop.f32.mrf.mxu0
        %v625 = vadd.f32 0.0, %v624
        %626 = vmatmul.bf16.gmra.mxu0 %v458
        %v627 = vpop.f32.mrf.mxu0
        %v628 = vadd.f32 0.0, %v627
        %v629 = vpop.f32.mrf.mxu0
        %v630 = vadd.f32 0.0, %v629
        %631 = vmatmul.bf16.gmra.mxu0 %v461
        %v632 = vpop.f32.mrf.mxu0
        %v633 = vadd.f32 0.0, %v632
        %v634 = vpop.f32.mrf.mxu0
        %v635 = vadd.f32 0.0, %v634
        %636 = vmatmul.bf16.gmra.mxu0 %v464
        %v637 = vpop.f32.mrf.mxu0
        %v638 = vadd.f32 0.0, %v637
        %v639 = vpop.f32.mrf.mxu0
        %v640 = vadd.f32 0.0, %v639
        %641 = vmatmul.bf16.gmra.mxu0 %v467
        %v642 = vpop.f32.mrf.mxu0
        %v643 = vadd.f32 0.0, %v642
        %v644 = vpop.f32.mrf.mxu0
        %v645 = vadd.f32 0.0, %v644
        %646 = vmatmul.bf16.gmra.mxu0 %v470
        %v647 = vpop.f32.mrf.mxu0
        %v648 = vadd.f32 0.0, %v647
        %v649 = vpop.f32.mrf.mxu0
        %v650 = vadd.f32 0.0, %v649
        %651 = vmatmul.bf16.gmra.mxu0 %v473
        %v652 = vpop.f32.mrf.mxu0
        %v653 = vadd.f32 0.0, %v652
        %v654 = vpop.f32.mrf.mxu0
        %v655 = vadd.f32 0.0, %v654
        %656 = vmatmul.bf16.gmra.mxu0 %v476
        %v657 = vpop.f32.mrf.mxu0
        %v658 = vadd.f32 0.0, %v657
        %v659 = vpop.f32.mrf.mxu0
        %v660 = vadd.f32 0.0, %v659
        %661 = vdwg.mxu0
        %v662 = vmax.f32 %v494, %v499
        %v663 = vmax.f32 %v496, %v501
        %v664 = vmax.f32 %v662, %v504
        %v665 = vmax.f32 %v663, %v506
        %v666 = vmax.f32 %v664, %v509
        %v667 = vmax.f32 %v665, %v511
        %v668 = vmax.f32 %v666, %v514
        %v669 = vmax.f32 %v667, %v516
        %v670 = vmax.f32 %v668, %v519
        %v671 = vmax.f32 %v669, %v521
        %v672 = vmax.f32 %v670, %v524
        %v673 = vmax.f32 %v671, %v526
        %v674 = vmax.f32 %v672, %v529
        %v675 = vmax.f32 %v673, %v531
        %v676 = vmax.f32 %v674, %v534
        %v677 = vmax.f32 %v675, %v536
        %v678 = vmax.f32 %v676, %v539
        %v679 = vmax.f32 %v677, %v541
        %v680 = vmax.f32 %v678, %v544
        %v681 = vmax.f32 %v679, %v546
        %v682 = vmax.f32 %v680, %v549
        %v683 = vmax.f32 %v681, %v551
        %v684 = vmax.f32 %v682, %v554
        %v685 = vmax.f32 %v683, %v556
        %v686 = vmax.f32 %v684, %v559
        %v687 = vmax.f32 %v685, %v561
        %v688 = vmax.f32 %v686, %v564
        %v689 = vmax.f32 %v687, %v566
        %v690 = vmax.f32 %v688, %v569
        %v691 = vmax.f32 %v689, %v571
        %v692 = vmax.f32 %v690, %v691
        %v693 = vrot.slane %v692, 4
        %v694 = vmax.f32 %v692, %v693
        %v695 = vrot.slane %v694, 2
        %v696 = vmax.f32 %v694, %v695
        %v697 = vrot.slane %v696, 1
        %v698 = vmax.f32 %v696, %v697
        %v699 = vmax.f32 %v583, %v588
        %v700 = vmax.f32 %v585, %v590
        %v701 = vmax.f32 %v699, %v593
        %v702 = vmax.f32 %v700, %v595
        %v703 = vmax.f32 %v701, %v598
        %v704 = vmax.f32 %v702, %v600
        %v705 = vmax.f32 %v703, %v603
        %v706 = vmax.f32 %v704, %v605
        %v707 = vmax.f32 %v705, %v608
        %v708 = vmax.f32 %v706, %v610
        %v709 = vmax.f32 %v707, %v613
        %v710 = vmax.f32 %v708, %v615
        %v711 = vmax.f32 %v709, %v618
        %v712 = vmax.f32 %v710, %v620
        %v713 = vmax.f32 %v711, %v623
        %v714 = vmax.f32 %v712, %v625
        %v715 = vmax.f32 %v713, %v628
        %v716 = vmax.f32 %v714, %v630
        %v717 = vmax.f32 %v715, %v633
        %v718 = vmax.f32 %v716, %v635
        %v719 = vmax.f32 %v717, %v638
        %v720 = vmax.f32 %v718, %v640
        %v721 = vmax.f32 %v719, %v643
        %v722 = vmax.f32 %v720, %v645
        %v723 = vmax.f32 %v721, %v648
        %v724 = vmax.f32 %v722, %v650
        %v725 = vmax.f32 %v723, %v653
        %v726 = vmax.f32 %v724, %v655
        %v727 = vmax.f32 %v725, %v658
        %v728 = vmax.f32 %v726, %v660
        %v729 = vmax.f32 %v727, %v728
        %v730 = vrot.slane %v729, 4
        %v731 = vmax.f32 %v729, %v730
        %v732 = vrot.slane %v731, 2
        %v733 = vmax.f32 %v731, %v732
        %v734 = vrot.slane %v733, 1
        %v735 = vmax.f32 %v733, %v734
        %v736 = vsub.f32 %v494, %v698
        %v737 = vsub.f32 %v583, %v735
        %v738 = vsub.f32 %v496, %v698
        %v739 = vsub.f32 %v585, %v735
        %v740 = vsub.f32 %v499, %v698
        %v741 = vsub.f32 %v588, %v735
        %v742 = vsub.f32 %v501, %v698
        %v743 = vsub.f32 %v590, %v735
        %v744 = vsub.f32 %v504, %v698
        %v745 = vsub.f32 %v593, %v735
        %v746 = vsub.f32 %v506, %v698
        %v747 = vsub.f32 %v595, %v735
        %v748 = vsub.f32 %v509, %v698
        %v749 = vsub.f32 %v598, %v735
        %v750 = vsub.f32 %v511, %v698
        %v751 = vsub.f32 %v600, %v735
        %v752 = vsub.f32 %v514, %v698
        %v753 = vsub.f32 %v603, %v735
        %v754 = vsub.f32 %v516, %v698
        %v755 = vsub.f32 %v605, %v735
        %v756 = vsub.f32 %v519, %v698
        %v757 = vsub.f32 %v608, %v735
        %v758 = vsub.f32 %v521, %v698
        %v759 = vsub.f32 %v610, %v735
        %v760 = vsub.f32 %v524, %v698
        %v761 = vsub.f32 %v613, %v735
        %v762 = vsub.f32 %v526, %v698
        %v763 = vsub.f32 %v615, %v735
        %v764 = vsub.f32 %v529, %v698
        %v765 = vsub.f32 %v618, %v735
        %v766 = vsub.f32 %v531, %v698
        %v767 = vsub.f32 %v620, %v735
        %v768 = vsub.f32 %v534, %v698
        %v769 = vsub.f32 %v623, %v735
        %v770 = vsub.f32 %v536, %v698
        %v771 = vsub.f32 %v625, %v735
        %v772 = vsub.f32 %v539, %v698
        %v773 = vsub.f32 %v628, %v735
        %v774 = vsub.f32 %v541, %v698
        %v775 = vsub.f32 %v630, %v735
        %v776 = vsub.f32 %v544, %v698
        %v777 = vsub.f32 %v633, %v735
        %v778 = vsub.f32 %v546, %v698
        %v779 = vsub.f32 %v635, %v735
        %v780 = vsub.f32 %v549, %v698
        %v781 = vsub.f32 %v638, %v735
        %v782 = vsub.f32 %v551, %v698
        %v783 = vsub.f32 %v640, %v735
        %v784 = vsub.f32 %v554, %v698
        %v785 = vsub.f32 %v643, %v735
        %v786 = vsub.f32 %v556, %v698
        %v787 = vsub.f32 %v645, %v735
        %v788 = vsub.f32 %v559, %v698
        %v789 = vsub.f32 %v648, %v735
        %v790 = vsub.f32 %v561, %v698
        %v791 = vsub.f32 %v650, %v735
        %v792 = vsub.f32 %v564, %v698
        %v793 = vsub.f32 %v653, %v735
        %v794 = vsub.f32 %v566, %v698
        %v795 = vsub.f32 %v655, %v735
        %v796 = vsub.f32 %v569, %v698
        %v797 = vsub.f32 %v658, %v735
        %v798 = vsub.f32 %v571, %v698
        %v799 = vsub.f32 %v660, %v735
        %v800 = vmul.f32 %v736, 1.442695
        %v801 = vpow.pop %v800
        %v802 = vmul.f32 %v737, 1.442695
        %v803 = vpow.pop %v802
        %v804 = vmul.f32 %v738, 1.442695
        %v805 = vpow.pop %v804
        %v806 = vmul.f32 %v739, 1.442695
        %v807 = vpow.pop %v806
        %v808 = vmul.f32 %v740, 1.442695
        %v809 = vpow.pop %v808
        %v810 = vmul.f32 %v741, 1.442695
        %v811 = vpow.pop %v810
        %v812 = vmul.f32 %v742, 1.442695
        %v813 = vpow.pop %v812
        %v814 = vmul.f32 %v743, 1.442695
        %v815 = vpow.pop %v814
        %v816 = vmul.f32 %v744, 1.442695
        %v817 = vpow.pop %v816
        %v818 = vmul.f32 %v745, 1.442695
        %v819 = vpow.pop %v818
        %v820 = vmul.f32 %v746, 1.442695
        %v821 = vpow.pop %v820
        %v822 = vmul.f32 %v747, 1.442695
        %v823 = vpow.pop %v822
        %v824 = vmul.f32 %v748, 1.442695
        %v825 = vpow.pop %v824
        %v826 = vmul.f32 %v749, 1.442695
        %v827 = vpow.pop %v826
        %v828 = vmul.f32 %v750, 1.442695
        %v829 = vpow.pop %v828
        %v830 = vmul.f32 %v751, 1.442695
        %v831 = vpow.pop %v830
        %v832 = vmul.f32 %v752, 1.442695
        %v833 = vpow.pop %v832
        %v834 = vmul.f32 %v753, 1.442695
        %v835 = vpow.pop %v834
        %v836 = vmul.f32 %v754, 1.442695
        %v837 = vpow.pop %v836
        %v838 = vmul.f32 %v755, 1.442695
        %v839 = vpow.pop %v838
        %v840 = vmul.f32 %v756, 1.442695
        %v841 = vpow.pop %v840
        %v842 = vmul.f32 %v757, 1.442695
        %v843 = vpow.pop %v842
        %v844 = vmul.f32 %v758, 1.442695
        %v845 = vpow.pop %v844
        %v846 = vmul.f32 %v759, 1.442695
        %v847 = vpow.pop %v846
        %v848 = vmul.f32 %v760, 1.442695
        %v849 = vpow.pop %v848
        %v850 = vmul.f32 %v761, 1.442695
        %v851 = vpow.pop %v850
        %v852 = vmul.f32 %v762, 1.442695
        %v853 = vpow.pop %v852
        %v854 = vmul.f32 %v763, 1.442695
        %v855 = vpow.pop %v854
        %v856 = vmul.f32 %v764, 1.442695
        %v857 = vpow.pop %v856
        %v858 = vmul.f32 %v765, 1.442695
        %v859 = vpow.pop %v858
        %v860 = vmul.f32 %v766, 1.442695
        %v861 = vpow.pop %v860
        %v862 = vmul.f32 %v767, 1.442695
        %v863 = vpow.pop %v862
        %v864 = vmul.f32 %v768, 1.442695
        %v865 = vpow.pop %v864
        %v866 = vmul.f32 %v769, 1.442695
        %v867 = vpow.pop %v866
        %v868 = vmul.f32 %v770, 1.442695
        %v869 = vpow.pop %v868
        %v870 = vmul.f32 %v771, 1.442695
        %v871 = vpow.pop %v870
        %v872 = vmul.f32 %v772, 1.442695
        %v873 = vpow.pop %v872
        %v874 = vmul.f32 %v773, 1.442695
        %v875 = vpow.pop %v874
        %v876 = vmul.f32 %v774, 1.442695
        %v877 = vpow.pop %v876
        %v878 = vmul.f32 %v775, 1.442695
        %v879 = vpow.pop %v878
        %v880 = vmul.f32 %v776, 1.442695
        %v881 = vpow.pop %v880
        %v882 = vmul.f32 %v777, 1.442695
        %v883 = vpow.pop %v882
        %v884 = vmul.f32 %v778, 1.442695
        %v885 = vpow.pop %v884
        %v886 = vmul.f32 %v779, 1.442695
        %v887 = vpow.pop %v886
        %v888 = vmul.f32 %v780, 1.442695
        %v889 = vpow.pop %v888
        %v890 = vmul.f32 %v781, 1.442695
        %v891 = vpow.pop %v890
        %v892 = vmul.f32 %v782, 1.442695
        %v893 = vpow.pop %v892
        %v894 = vmul.f32 %v783, 1.442695
        %v895 = vpow.pop %v894
        %v896 = vmul.f32 %v784, 1.442695
        %v897 = vpow.pop %v896
        %v898 = vmul.f32 %v785, 1.442695
        %v899 = vpow.pop %v898
        %v900 = vmul.f32 %v786, 1.442695
        %v901 = vpow.pop %v900
        %v902 = vmul.f32 %v787, 1.442695
        %v903 = vpow.pop %v902
        %v904 = vmul.f32 %v788, 1.442695
        %v905 = vpow.pop %v904
        %v906 = vmul.f32 %v789, 1.442695
        %v907 = vpow.pop %v906
        %v908 = vmul.f32 %v790, 1.442695
        %v909 = vpow.pop %v908
        %v910 = vmul.f32 %v791, 1.442695
        %v911 = vpow.pop %v910
        %v912 = vmul.f32 %v792, 1.442695
        %v913 = vpow.pop %v912
        %v914 = vmul.f32 %v793, 1.442695
        %v915 = vpow.pop %v914
        %v916 = vmul.f32 %v794, 1.442695
        %v917 = vpow.pop %v916
        %v918 = vmul.f32 %v795, 1.442695
        %v919 = vpow.pop %v918
        %v920 = vmul.f32 %v796, 1.442695
        %v921 = vpow.pop %v920
        %v922 = vmul.f32 %v797, 1.442695
        %v923 = vpow.pop %v922
        %v924 = vmul.f32 %v798, 1.442695
        %v925 = vpow.pop %v924
        %v926 = vmul.f32 %v799, 1.442695
        %v927 = vpow.pop %v926
        %v928 = vadd.f32 %v801, %v805
        %v929 = vadd.f32 %v928, %v809
        %v930 = vadd.f32 %v929, %v813
        %v931 = vadd.f32 %v930, %v817
        %v932 = vadd.f32 %v931, %v821
        %v933 = vadd.f32 %v932, %v825
        %v934 = vadd.f32 %v933, %v829
        %v935 = vadd.f32 %v934, %v833
        %v936 = vadd.f32 %v935, %v837
        %v937 = vadd.f32 %v936, %v841
        %v938 = vadd.f32 %v937, %v845
        %v939 = vadd.f32 %v938, %v849
        %v940 = vadd.f32 %v939, %v853
        %v941 = vadd.f32 %v940, %v857
        %v942 = vadd.f32 %v941, %v861
        %v943 = vadd.f32 %v942, %v865
        %v944 = vadd.f32 %v943, %v869
        %v945 = vadd.f32 %v944, %v873
        %v946 = vadd.f32 %v945, %v877
        %v947 = vadd.f32 %v946, %v881
        %v948 = vadd.f32 %v947, %v885
        %v949 = vadd.f32 %v948, %v889
        %v950 = vadd.f32 %v949, %v893
        %v951 = vadd.f32 %v950, %v897
        %v952 = vadd.f32 %v951, %v901
        %v953 = vadd.f32 %v952, %v905
        %v954 = vadd.f32 %v953, %v909
        %v955 = vadd.f32 %v954, %v913
        %v956 = vadd.f32 %v955, %v917
        %v957 = vadd.f32 %v956, %v921
        %v958 = vadd.f32 %v957, %v925
        %v959 = vrot.slane %v958, 4
        %v960 = vadd.f32 %v958, %v959
        %v961 = vrot.slane %v960, 2
        %v962 = vadd.f32 %v960, %v961
        %v963 = vrot.slane %v962, 1
        %v964 = vadd.f32 %v962, %v963
        %v965 = vadd.f32 %v803, %v807
        %v966 = vadd.f32 %v965, %v811
        %v967 = vadd.f32 %v966, %v815
        %v968 = vadd.f32 %v967, %v819
        %v969 = vadd.f32 %v968, %v823
        %v970 = vadd.f32 %v969, %v827
        %v971 = vadd.f32 %v970, %v831
        %v972 = vadd.f32 %v971, %v835
        %v973 = vadd.f32 %v972, %v839
        %v974 = vadd.f32 %v973, %v843
        %v975 = vadd.f32 %v974, %v847
        %v976 = vadd.f32 %v975, %v851
        %v977 = vadd.f32 %v976, %v855
        %v978 = vadd.f32 %v977, %v859
        %v979 = vadd.f32 %v978, %v863
        %v980 = vadd.f32 %v979, %v867
        %v981 = vadd.f32 %v980, %v871
        %v982 = vadd.f32 %v981, %v875
        %v983 = vadd.f32 %v982, %v879
        %v984 = vadd.f32 %v983, %v883
        %v985 = vadd.f32 %v984, %v887
        %v986 = vadd.f32 %v985, %v891
        %v987 = vadd.f32 %v986, %v895
        %v988 = vadd.f32 %v987, %v899
        %v989 = vadd.f32 %v988, %v903
        %v990 = vadd.f32 %v989, %v907
        %v991 = vadd.f32 %v990, %v911
        %v992 = vadd.f32 %v991, %v915
        %v993 = vadd.f32 %v992, %v919
        %v994 = vadd.f32 %v993, %v923
        %v995 = vadd.f32 %v994, %v927
        %v996 = vrot.slane %v995, 4
        %v997 = vadd.f32 %v995, %v996
        %v998 = vrot.slane %v997, 2
        %v999 = vadd.f32 %v997, %v998
        %v1000 = vrot.slane %v999, 1
        %v1001 = vadd.f32 %v999, %v1000
        %v1002 = vld [vmem:[#allocation3] sm:$0xf]
        %v1003 = vpack.c.bf16 %v805, %v801
        %v1004 = vpack.c.bf16 %v807, %v803
        %v1005 = vpack.c.bf16 %v813, %v809
        %v1006 = vpack.c.bf16 %v815, %v811
        %v1007 = vpack.c.bf16 %v821, %v817
        %v1008 = vpack.c.bf16 %v823, %v819
        %v1009 = vpack.c.bf16 %v829, %v825
        %v1010 = vpack.c.bf16 %v831, %v827
        %v1011 = vpack.c.bf16 %v837, %v833
        %v1012 = vpack.c.bf16 %v839, %v835
        %v1013 = vpack.c.bf16 %v845, %v841
        %v1014 = vpack.c.bf16 %v847, %v843
        %v1015 = vpack.c.bf16 %v853, %v849
        %v1016 = vpack.c.bf16 %v855, %v851
        %v1017 = vpack.c.bf16 %v861, %v857
        %v1018 = vpack.c.bf16 %v863, %v859
        %v1019 = vpack.c.bf16 %v869, %v865
        %v1020 = vpack.c.bf16 %v871, %v867
        %v1021 = vpack.c.bf16 %v877, %v873
        %v1022 = vpack.c.bf16 %v879, %v875
        %v1023 = vpack.c.bf16 %v885, %v881
        %v1024 = vpack.c.bf16 %v887, %v883
        %v1025 = vpack.c.bf16 %v893, %v889
        %v1026 = vpack.c.bf16 %v895, %v891
        %v1027 = vpack.c.bf16 %v901, %v897
        %v1028 = vpack.c.bf16 %v903, %v899
        %v1029 = vpack.c.bf16 %v909, %v905
        %v1030 = vpack.c.bf16 %v911, %v907
        %v1031 = vpack.c.bf16 %v917, %v913
        %v1032 = vpack.c.bf16 %v919, %v915
        %v1033 = vpack.c.bf16 %v925, %v921
        %v1034 = vpack.c.bf16 %v927, %v923
        %1036 = vst [vmem:[#allocation1] ss:$4 sm:$0xff] %v1002
        %v1037 = vld.sshfl [vmem:[#allocation1] sm:$0xff pattern:$0x73625140]
        %v1038 = vld.sshfl [vmem:[#allocation1 + $0x8] sm:$0xff pattern:$0x73625140]
        %1041 = vmatpush.bf16.msra.mxu0 %v1017
        %1042 = vmatpush.bf16.msra.mxu0 %v1015
        %1043 = vmatpush.bf16.msra.mxu0 %v1013
        %1044 = vmatpush.bf16.msra.mxu0 %v1011
        %1045 = vmatpush.bf16.msra.mxu0 %v1009
        %1046 = vmatpush.bf16.msra.mxu0 %v1007
        %1047 = vmatpush.bf16.msra.mxu0 %v1005
        %1048 = vmatpush.bf16.msra.mxu0 %v1003
        %1049 = vmatmul.bf16.gmra.mxu0 %v1037
        %v1050 = vpop.f32.mrf.mxu0
        %v1051 = vadd.f32 0.0, %v1050
        %v1052 = vpop.f32.mrf.mxu0
        %1053 = vdwg.mxu0
        %1054 = vmatpush.bf16.msra.mxu0 %v1033
        %1055 = vmatpush.bf16.msra.mxu0 %v1031
        %1056 = vmatpush.bf16.msra.mxu0 %v1029
        %1057 = vmatpush.bf16.msra.mxu0 %v1027
        %1058 = vmatpush.bf16.msra.mxu0 %v1025
        %1059 = vmatpush.bf16.msra.mxu0 %v1023
        %1060 = vmatpush.bf16.msra.mxu0 %v1021
        %1061 = vmatpush.bf16.msra.mxu0 %v1019
        %1062 = vmatmul.bf16.gmra.mxu0 %v1038
        %v1063 = vpop.f32.mrf.mxu0
        %v1064 = vadd.f32 %v1051, %v1063
        %v1065 = vpop.f32.mrf.mxu0
        %1066 = vdwg.mxu0
        %1067 = vmatpush.bf16.msra.mxu0 %v1018
        %1068 = vmatpush.bf16.msra.mxu0 %v1016
        %1069 = vmatpush.bf16.msra.mxu0 %v1014
        %1070 = vmatpush.bf16.msra.mxu0 %v1012
        %1071 = vmatpush.bf16.msra.mxu0 %v1010
        %1072 = vmatpush.bf16.msra.mxu0 %v1008
        %1073 = vmatpush.bf16.msra.mxu0 %v1006
        %1074 = vmatpush.bf16.msra.mxu0 %v1004
        %1075 = vmatmul.bf16.gmra.mxu0 %v1037
        %v1076 = vpop.f32.mrf.mxu0
        %v1077 = vadd.f32 0.0, %v1076
        %v1078 = vpop.f32.mrf.mxu0
        %1079 = vdwg.mxu0
        %1080 = vmatpush.bf16.msra.mxu0 %v1034
        %1081 = vmatpush.bf16.msra.mxu0 %v1032
        %1082 = vmatpush.bf16.msra.mxu0 %v1030
        %1083 = vmatpush.bf16.msra.mxu0 %v1028
        %1084 = vmatpush.bf16.msra.mxu0 %v1026
        %1085 = vmatpush.bf16.msra.mxu0 %v1024
        %1086 = vmatpush.bf16.msra.mxu0 %v1022
        %1087 = vmatpush.bf16.msra.mxu0 %v1020
        %1088 = vmatmul.bf16.gmra.mxu0 %v1038
        %v1089 = vpop.f32.mrf.mxu0
        %v1090 = vadd.f32 %v1077, %v1089
        %v1091 = vpop.f32.mrf.mxu0
        %1092 = vdwg.mxu0
        %v1093 = vrcp.pop %v964
        %v1094 = vmul.f32 %v964, %v1093
        %v1095 = vsub.f32 1.0, %v1094
        %v1096 = vmul.f32 %v1093, %v1095
        %v1097 = vadd.f32 %v1093, %v1096
        %vm1098 = vweird.f32 %v964
        %vm1099 = vweird.f32 %v1093
        %vm1100 = vmor %vm1098, %vm1099
        %v1101 = vsel %vm1100, %v1093, %v1097
        %v1102 = vand.u32 2147483647, %v964
        %vm1103 = vcmp.eq.f32.partialorder %v1102, 8.507059e+37
        %v1104 = vand.u32 %v964, 2147483648
        %v1105 = vor.u32 1.1754944e-38, %v1104
        %v1106 = vsel %vm1103, %v1105, %v1101
        %v1107 = vrcp.pop %v1001
        %v1108 = vmul.f32 %v1001, %v1107
        %v1109 = vsub.f32 1.0, %v1108
        %v1110 = vmul.f32 %v1107, %v1109
        %v1111 = vadd.f32 %v1107, %v1110
        %vm1112 = vweird.f32 %v1001
        %vm1113 = vweird.f32 %v1107
        %vm1114 = vmor %vm1112, %vm1113
        %v1115 = vsel %vm1114, %v1107, %v1111
        %v1116 = vand.u32 2147483647, %v1001
        %vm1117 = vcmp.eq.f32.partialorder %v1116, 8.507059e+37
        %v1118 = vand.u32 %v1001, 2147483648
        %v1119 = vor.u32 1.1754944e-38, %v1118
        %v1120 = vsel %vm1117, %v1119, %v1115
        %s1121 = sld [smem:[#allocation4]]
        %v1122 = vstv %s1121
        %v1123 = vmul.f32 %v1122, %v1064
        %v1124 = vmul.f32 %v1122, %v1090
        %v1125 = vmul.f32 %v1123, %v1106
        %v1126 = vmul.f32 %v1124, %v1120
        %1127 = vst [vmem:[#allocation1] ss:$2 sm:$0xff] %v343
        %v1128 = vld.sshfl [vmem:[#allocation1] sm:$0xff pattern:$0x75316420]
        %v1129 = vld.sshfl [vmem:[#allocation1 + $0x8] sm:$0xff pattern:$0x75316420]
        %v1132 = vadd.f32 %v1125, %v1128
        %v1133 = vadd.f32 %v1126, %v1129
        %v1136 = vrot.slane %v1133, 4
        %vm1137 = vcmask 1043456
        %v1138 = vsel %vm1137, %v1132, %v1136
        %1140 = vst [vmem:[%s259] sm:$0xff] %v1138
        %s1141 = sand.u32 %s174, 1
        %s1142 = scalar_lea.sflag [#allocation6], %s1141
        %s1143 = sand.u32 %s174, 1
        %s1144 = smul.addr %s1143, 8
        %s1145 = scalar_lea.vmem [#allocation5], %s1144
        // Predicated region
        $region49: #{tpu_custom_call.1} parent=43 // pred_check
          %p1146 = pneg %p184
        $region50: #{tpu_custom_call.1} parent=43 // pred_check_branch
          %1148 = sbr.rel (%p1146) target = $region52
        $region51: #{tpu_custom_call.1} parent=43 // pred_region
          %s1149 = smul.u32 2, %s26
          %1151 = vsyncadd %s1142, 0
          %s1152 = smul.addr %s25, 2
          %s1153 = sadd.s32 %s1149, %s1152
          %s1154 = smul.addr %s1153, 4
          %s1155 = scalar_lea.hbm %s6, %s1154
          %s1157 = sshll.u32 %s1145, 4
          %s1158 = int_to_ptr.vmem [resolvable:$true] %s1157
          %s1159 = sshll.u32 %s1155, 4
          %s1160 = int_to_ptr.hbm [resolvable:$true] %s1159
          %1162 = dma.vmem_to_hbm [thread:$0]  %s1158, 128, %s1160, %s1142
        $region52: #{tpu_custom_call.1} parent=43 // pred_fallthru
          _
      $region44: #{tpu_custom_call.1} parent=5 // pred_fallthru
        _
      %p1163 = scmp.le.s32.totalorder 2, %s16
      // Predicated region
      $region53: #{tpu_custom_call.1} parent=5 // pred_check
        %p1164 = pneg %p1163
      $region54: #{tpu_custom_call.1} parent=5 // pred_check_branch
        %1166 = sbr.rel (%p1164) target = $region56
      $region55: #{tpu_custom_call.1} parent=5 // pred_region
        %s1167 = ssub.s32 %s16, 2
        // Predicated region
        $region57: #{tpu_custom_call.1} parent=55 // pred_check
          %p1168 = pneg %p190
        $region58: #{tpu_custom_call.1} parent=55 // pred_check_branch
          %1170 = sbr.rel (%p1168) target = $region60
        $region59: #{tpu_custom_call.1} parent=55 // pred_region
          %s1171 = sand.u32 %s175, 1
          %s1172 = scalar_lea.sflag [#allocation6], %s1171
          %s1173 = sand.u32 %s175, 1
          %s1174 = smul.addr %s1173, 8
          %s1175 = scalar_lea.vmem [#allocation5], %s1174
          %1177 = dma.done %s1172, 128
        $region60: #{tpu_custom_call.1} parent=55 // pred_fallthru
          _
      $region56: #{tpu_custom_call.1} parent=5 // pred_fallthru
        _
    $region6: #{tpu_custom_call.1} parent=1 // loop_footer
      %s20 = sadd.s32 1, %s16
    $region7: #{tpu_custom_call.1} parent=1 // loop_footer_branch
      %15 = sbr.rel target = $region3
    $region8: #{tpu_custom_call.1} parent=1 // loop_exit
      _
    %1178 = vsyncpa [#allocation6], 1
    %s1179 = scalar_lea.sflag [#allocation6], 1
    %1180 = vsyncpa %s1179, 1

</llo_original>
